<compile_context>
chip_gen: v7x
topology: tpu7x:2x2x1
jax: 0.10.0
libtpu: 0.0.40
codegen_flags: <defaults>
</compile_context>

<pallas_src>
import functools

import jax
import jax.numpy as jnp
from jax.experimental import pallas as pl
from jax.experimental.pallas import tpu as pltpu

_LANE = 128
_SUBLANE = 8
_TARGET_BLOCK_BYTES = 1 << 20  # ~1 MiB per input block


def _hash_u32(v):
    """lowbias32 integer hash (uint32 -> uint32), pure VPU bit ops."""
    v = v ^ (v >> 16)
    v = v * jnp.uint32(0x7FEB352D)
    v = v ^ (v >> 15)
    v = v * jnp.uint32(0x846CA68B)
    v = v ^ (v >> 16)
    return v


def _gaussian_noise_kernel(seed_ref, x_ref, o_ref):
    tile_rows, lane_w = x_ref.shape

    # Global (flattened) element index of every lane in this tile.  Noise
    # depends only on (seed, element index), never on the tile/grid layout.
    # NOTE: int32 index math is fine for tensors up to ~2^31 elements.
    r = jax.lax.broadcasted_iota(jnp.int32, (tile_rows, lane_w), 0)
    c = jax.lax.broadcasted_iota(jnp.int32, (tile_rows, lane_w), 1)
    base = pl.program_id(0) * (tile_rows * lane_w)
    idx = (base + r * lane_w + c).astype(jnp.uint32)

    seed_mix = seed_ref[0].astype(jnp.uint32) * jnp.uint32(0x9E3779B9)
    h = _hash_u32(idx ^ seed_mix)
    h = _hash_u32(h ^ jnp.uint32(0x85EBCA6B))

    # 24 random bits -> uniform in (0, 1) -> standard normal via inverse CDF
    # (one transcendental per element; cheaper than Box-Muller's 2+ on v5e).
    bits = (h >> 8).astype(jnp.int32)                      # value in [0, 2^24)
    u = bits.astype(jnp.float32) * jnp.float32(1.0 / (1 << 24)) \
        + jnp.float32(0.5 / (1 << 24))
    g = jnp.float32(1.4142135623730951) * jax.lax.erf_inv(2.0 * u - 1.0)

    noise = (g - jnp.float32(0.5)) * jnp.float32(0.1)      # (randn - 0.5) / 10
    o_ref[...] = (x_ref[...].astype(jnp.float32) + noise).astype(o_ref.dtype)


def _choose_layout(total):
    """Pick (lane_w, padded_total, needs_pad) for a lane-dense 2-D slab."""
    for lane_w in (8192, 4096, 2048, 1024, 512, 256, 128):
        if total % (lane_w * _SUBLANE) == 0:
            return lane_w, total, False
    # Ragged size: fall back to padding at the minimum legal (8, 128) granule.
    # TODO(synk): handle the ragged tail with an in-kernel masked store instead
    # of the pad/slice HBM round trip.
    chunk = _LANE * _SUBLANE
    padded = pl.cdiv(total, chunk) * chunk
    return _LANE, padded, True


@functools.partial(jax.jit, static_argnames=("training",))
def gaussian_noise_layer(x, seed, *, training=True):
    """Forward pass of GaussianNoiseLayer.

    x        : any-shape float array (NCHW in the reference module).
    seed     : int32 scalar seed for the in-kernel counter-based PRNG.
    training : Python bool; eval mode returns x unchanged (no kernel launch).
    """
    if not training:
        return x

    orig_shape = x.shape
    orig_dtype = x.dtype
    total = x.size
    itemsize = x.dtype.itemsize

    lane_w, padded, needs_pad = _choose_layout(total)
    x_flat = jnp.ravel(x)
    if needs_pad:
        x_flat = jnp.pad(x_flat, (0, padded - total))
    rows = padded // lane_w
    x2d = x_flat.reshape(rows, lane_w)

    # ~1 MiB blocks, sublane aligned; double-buffered in+out stays well under
    # the default scoped VMEM on v5e/v6e/v7x.
    tile_rows = (_TARGET_BLOCK_BYTES // (lane_w * itemsize)) // _SUBLANE * _SUBLANE
    tile_rows = max(_SUBLANE, min(rows, tile_rows))
    grid = (pl.cdiv(rows, tile_rows),)

    seed_arr = jnp.reshape(jnp.asarray(seed, dtype=jnp.int32), (1,))

    out2d = pl.pallas_call(
        _gaussian_noise_kernel,
        out_shape=jax.ShapeDtypeStruct((rows, lane_w), orig_dtype),
        grid_spec=pltpu.PrefetchScalarGridSpec(
            num_scalar_prefetch=1,
            grid=grid,
            in_specs=[pl.BlockSpec((tile_rows, lane_w), lambda i, seed_ref: (i, 0))],
            out_specs=pl.BlockSpec((tile_rows, lane_w), lambda i, seed_ref: (i, 0)),
        ),
        compiler_params=pltpu.CompilerParams(
            dimension_semantics=("parallel",),
        ),
        cost_estimate=pl.CostEstimate(
            flops=12 * padded,                 # hash + inverse-CDF polynomial (VPU)
            transcendentals=padded,            # ~1 log per element inside erf_inv
            bytes_accessed=2 * padded * itemsize,
        ),
    )(seed_arr, x2d)

    if needs_pad:
        return out2d.reshape(padded)[:total].reshape(orig_shape)
    return out2d.reshape(orig_shape)


if __name__ == "__main__":
    key = jax.random.PRNGKey(0)
    # Small NCHW input consistent with a conv-net feature map.
    x = jax.random.normal(key, (2, 4, 16, 16), dtype=jnp.float32)

    # Training mode: x + (N(0,1) - 0.5)/10
    y_train = gaussian_noise_layer(x, seed=1234, training=True)
    y_train = jax.block_until_ready(y_train)
    assert y_train.shape == x.shape and y_train.dtype == x.dtype

    # Sanity: perturbation small, non-zero, mean ~ -0.05.
    delta = y_train - x
    assert float(jnp.max(jnp.abs(delta))) > 0.0
    assert float(jnp.max(jnp.abs(delta))) < 1.0
    assert abs(float(jnp.mean(delta)) + 0.05) < 0.05

    # Eval mode: identity.
    y_eval = gaussian_noise_layer(x, seed=1234, training=False)
    y_eval = jax.block_until_ready(y_eval)
    assert bool(jnp.all(y_eval == x))

    print("KERNEL_OK")
</pallas_src>

<mosaic_0001>
module attributes {stable_mosaic.version = 11 : i64} {
  func.func @_gaussian_noise_kernel(%arg0: i32, %arg1: memref<1xi32, #tpu.memory_space<smem>>, %arg2: memref<8x256xf32, #tpu.memory_space<vmem>>, %arg3: memref<8x256xf32, #tpu.memory_space<vmem>>) attributes {dimension_semantics = [#tpu.dimension_semantics<parallel>], iteration_bounds = array<i64: 1>, scalar_prefetch = 1 : i64, scratch_operands = 0 : i64, tpu.core_type = #tpu.core_type<tc>, window_params = [{transform_indices = @transform_0, window_bounds = array<i64: 8, 256>}, {transform_indices = @transform_1, window_bounds = array<i64: 8, 256>}]} {
    %0 = tpu.iota {dimensions = array<i32: 0>} : vector<8x256xi32>
    %1 = tpu.iota {dimensions = array<i32: 1>} : vector<8x256xi32>
    %c2048_i32 = arith.constant 2048 : i32
    %2 = arith.muli %arg0, %c2048_i32 : i32
    %c256_i32 = arith.constant 256 : i32
    %3 = vector.broadcast %c256_i32 : i32 to vector<8x256xi32>
    %4 = arith.muli %0, %3 : vector<8x256xi32>
    %5 = vector.broadcast %2 : i32 to vector<8x256xi32>
    %6 = arith.addi %5, %4 : vector<8x256xi32>
    %7 = arith.addi %6, %1 : vector<8x256xi32>
    %c0 = arith.constant 0 : index
    %8 = memref.load %arg1[%c0] : memref<1xi32, #tpu.memory_space<smem>>
    %c-1640531527_i32 = arith.constant -1640531527 : i32
    %9 = arith.muli %8, %c-1640531527_i32 : i32
    %10 = vector.broadcast %9 : i32 to vector<8x256xi32>
    %11 = arith.xori %7, %10 : vector<8x256xi32>
    %c16_i32 = arith.constant 16 : i32
    %12 = vector.broadcast %c16_i32 : i32 to vector<8x256xi32>
    %13 = arith.shrui %11, %12 : vector<8x256xi32>
    %14 = arith.xori %11, %13 : vector<8x256xi32>
    %c2146121005_i32 = arith.constant 2146121005 : i32
    %15 = vector.broadcast %c2146121005_i32 : i32 to vector<8x256xi32>
    %16 = arith.muli %14, %15 : vector<8x256xi32>
    %c15_i32 = arith.constant 15 : i32
    %17 = vector.broadcast %c15_i32 : i32 to vector<8x256xi32>
    %18 = arith.shrui %16, %17 : vector<8x256xi32>
    %19 = arith.xori %16, %18 : vector<8x256xi32>
    %c-2073254261_i32 = arith.constant -2073254261 : i32
    %20 = vector.broadcast %c-2073254261_i32 : i32 to vector<8x256xi32>
    %21 = arith.muli %19, %20 : vector<8x256xi32>
    %c16_i32_0 = arith.constant 16 : i32
    %22 = vector.broadcast %c16_i32_0 : i32 to vector<8x256xi32>
    %23 = arith.shrui %21, %22 : vector<8x256xi32>
    %24 = arith.xori %21, %23 : vector<8x256xi32>
    %c-2048144789_i32 = arith.constant -2048144789 : i32
    %25 = vector.broadcast %c-2048144789_i32 : i32 to vector<8x256xi32>
    %26 = arith.xori %24, %25 : vector<8x256xi32>
    %c16_i32_1 = arith.constant 16 : i32
    %27 = vector.broadcast %c16_i32_1 : i32 to vector<8x256xi32>
    %28 = arith.shrui %26, %27 : vector<8x256xi32>
    %29 = arith.xori %26, %28 : vector<8x256xi32>
    %c2146121005_i32_2 = arith.constant 2146121005 : i32
    %30 = vector.broadcast %c2146121005_i32_2 : i32 to vector<8x256xi32>
    %31 = arith.muli %29, %30 : vector<8x256xi32>
    %c15_i32_3 = arith.constant 15 : i32
    %32 = vector.broadcast %c15_i32_3 : i32 to vector<8x256xi32>
    %33 = arith.shrui %31, %32 : vector<8x256xi32>
    %34 = arith.xori %31, %33 : vector<8x256xi32>
    %c-2073254261_i32_4 = arith.constant -2073254261 : i32
    %35 = vector.broadcast %c-2073254261_i32_4 : i32 to vector<8x256xi32>
    %36 = arith.muli %34, %35 : vector<8x256xi32>
    %c16_i32_5 = arith.constant 16 : i32
    %37 = vector.broadcast %c16_i32_5 : i32 to vector<8x256xi32>
    %38 = arith.shrui %36, %37 : vector<8x256xi32>
    %39 = arith.xori %36, %38 : vector<8x256xi32>
    %c8_i32 = arith.constant 8 : i32
    %40 = vector.broadcast %c8_i32 : i32 to vector<8x256xi32>
    %41 = arith.shrui %39, %40 : vector<8x256xi32>
    %42 = arith.sitofp %41 : vector<8x256xi32> to vector<8x256xf32>
    %cst = arith.constant 5.96046448E-8 : f32
    %43 = vector.broadcast %cst : f32 to vector<8x256xf32>
    %44 = arith.mulf %42, %43 : vector<8x256xf32>
    %cst_6 = arith.constant 2.98023224E-8 : f32
    %45 = vector.broadcast %cst_6 : f32 to vector<8x256xf32>
    %46 = arith.addf %44, %45 : vector<8x256xf32>
    %cst_7 = arith.constant 2.000000e+00 : f32
    %47 = vector.broadcast %cst_7 : f32 to vector<8x256xf32>
    %48 = arith.mulf %47, %46 : vector<8x256xf32>
    %cst_8 = arith.constant 1.000000e+00 : f32
    %49 = vector.broadcast %cst_8 : f32 to vector<8x256xf32>
    %50 = arith.subf %48, %49 : vector<8x256xf32>
    %cst_9 = arith.constant 0.000000e+00 : f32
    %51 = vector.broadcast %cst_9 : f32 to vector<8x256xf32>
    %52 = arith.subf %51, %50 : vector<8x256xf32>
    %53 = arith.mulf %50, %52 : vector<8x256xf32>
    %54 = math.log1p %53 : vector<8x256xf32>
    %cst_10 = arith.constant 0.000000e+00 : f32
    %55 = vector.broadcast %cst_10 : f32 to vector<8x256xf32>
    %56 = arith.subf %55, %54 : vector<8x256xf32>
    %cst_11 = arith.constant 5.000000e+00 : f32
    %57 = vector.broadcast %cst_11 : f32 to vector<8x256xf32>
    %58 = arith.cmpf olt, %56, %57 : vector<8x256xf32>
    %cst_12 = arith.constant 2.500000e+00 : f32
    %59 = vector.broadcast %cst_12 : f32 to vector<8x256xf32>
    %60 = arith.subf %56, %59 : vector<8x256xf32>
    %61 = math.sqrt %56 : vector<8x256xf32>
    %cst_13 = arith.constant 3.000000e+00 : f32
    %62 = vector.broadcast %cst_13 : f32 to vector<8x256xf32>
    %63 = arith.subf %61, %62 : vector<8x256xf32>
    %64 = arith.select %58, %60, %63 : vector<8x256xi1>, vector<8x256xf32>
    %cst_14 = arith.constant 2.81022636E-8 : f32
    %cst_15 = arith.constant -2.00214257E-4 : f32
    %65 = vector.broadcast %cst_14 : f32 to vector<8x256xf32>
    %66 = vector.broadcast %cst_15 : f32 to vector<8x256xf32>
    %67 = arith.select %58, %65, %66 : vector<8x256xi1>, vector<8x256xf32>
    %cst_16 = arith.constant 3.43273939E-7 : f32
    %cst_17 = arith.constant 1.00950558E-4 : f32
    %68 = vector.broadcast %cst_16 : f32 to vector<8x256xf32>
    %69 = vector.broadcast %cst_17 : f32 to vector<8x256xf32>
    %70 = arith.select %58, %68, %69 : vector<8x256xi1>, vector<8x256xf32>
    %71 = arith.mulf %67, %64 : vector<8x256xf32>
    %72 = arith.addf %70, %71 : vector<8x256xf32>
    %cst_18 = arith.constant -3.5233877E-6 : f32
    %cst_19 = arith.constant 0.00134934322 : f32
    %73 = vector.broadcast %cst_18 : f32 to vector<8x256xf32>
    %74 = vector.broadcast %cst_19 : f32 to vector<8x256xf32>
    %75 = arith.select %58, %73, %74 : vector<8x256xi1>, vector<8x256xf32>
    %76 = arith.mulf %72, %64 : vector<8x256xf32>
    %77 = arith.addf %75, %76 : vector<8x256xf32>
    %cst_20 = arith.constant -4.39150654E-6 : f32
    %cst_21 = arith.constant -0.00367342844 : f32
    %78 = vector.broadcast %cst_20 : f32 to vector<8x256xf32>
    %79 = vector.broadcast %cst_21 : f32 to vector<8x256xf32>
    %80 = arith.select %58, %78, %79 : vector<8x256xi1>, vector<8x256xf32>
    %81 = arith.mulf %77, %64 : vector<8x256xf32>
    %82 = arith.addf %80, %81 : vector<8x256xf32>
    %cst_22 = arith.constant 2.1858087E-4 : f32
    %cst_23 = arith.constant 0.00573950773 : f32
    %83 = vector.broadcast %cst_22 : f32 to vector<8x256xf32>
    %84 = vector.broadcast %cst_23 : f32 to vector<8x256xf32>
    %85 = arith.select %58, %83, %84 : vector<8x256xi1>, vector<8x256xf32>
    %86 = arith.mulf %82, %64 : vector<8x256xf32>
    %87 = arith.addf %85, %86 : vector<8x256xf32>
    %cst_24 = arith.constant -0.00125372503 : f32
    %cst_25 = arith.constant -0.0076224613 : f32
    %88 = vector.broadcast %cst_24 : f32 to vector<8x256xf32>
    %89 = vector.broadcast %cst_25 : f32 to vector<8x256xf32>
    %90 = arith.select %58, %88, %89 : vector<8x256xi1>, vector<8x256xf32>
    %91 = arith.mulf %87, %64 : vector<8x256xf32>
    %92 = arith.addf %90, %91 : vector<8x256xf32>
    %cst_26 = arith.constant -0.00417768164 : f32
    %cst_27 = arith.constant 0.00943887047 : f32
    %93 = vector.broadcast %cst_26 : f32 to vector<8x256xf32>
    %94 = vector.broadcast %cst_27 : f32 to vector<8x256xf32>
    %95 = arith.select %58, %93, %94 : vector<8x256xi1>, vector<8x256xf32>
    %96 = arith.mulf %92, %64 : vector<8x256xf32>
    %97 = arith.addf %95, %96 : vector<8x256xf32>
    %cst_28 = arith.constant 0.246640727 : f32
    %cst_29 = arith.constant 1.00167406 : f32
    %98 = vector.broadcast %cst_28 : f32 to vector<8x256xf32>
    %99 = vector.broadcast %cst_29 : f32 to vector<8x256xf32>
    %100 = arith.select %58, %98, %99 : vector<8x256xi1>, vector<8x256xf32>
    %101 = arith.mulf %97, %64 : vector<8x256xf32>
    %102 = arith.addf %100, %101 : vector<8x256xf32>
    %cst_30 = arith.constant 1.50140941 : f32
    %cst_31 = arith.constant 2.83297682 : f32
    %103 = vector.broadcast %cst_30 : f32 to vector<8x256xf32>
    %104 = vector.broadcast %cst_31 : f32 to vector<8x256xf32>
    %105 = arith.select %58, %103, %104 : vector<8x256xi1>, vector<8x256xf32>
    %106 = arith.mulf %102, %64 : vector<8x256xf32>
    %107 = arith.addf %105, %106 : vector<8x256xf32>
    %108 = math.absf %50 : vector<8x256xf32>
    %cst_32 = arith.constant 1.000000e+00 : f32
    %109 = vector.broadcast %cst_32 : f32 to vector<8x256xf32>
    %110 = arith.cmpf oeq, %108, %109 : vector<8x256xf32>
    %cst_33 = arith.constant 0x7F800000 : f32
    %111 = vector.broadcast %cst_33 : f32 to vector<8x256xf32>
    %112 = arith.mulf %111, %50 : vector<8x256xf32>
    %113 = arith.mulf %107, %50 : vector<8x256xf32>
    %114 = arith.select %110, %112, %113 : vector<8x256xi1>, vector<8x256xf32>
    %cst_34 = arith.constant 1.41421354 : f32
    %115 = vector.broadcast %cst_34 : f32 to vector<8x256xf32>
    %116 = arith.mulf %115, %114 : vector<8x256xf32>
    %cst_35 = arith.constant 5.000000e-01 : f32
    %117 = vector.broadcast %cst_35 : f32 to vector<8x256xf32>
    %118 = arith.subf %116, %117 : vector<8x256xf32>
    %cst_36 = arith.constant 1.000000e-01 : f32
    %119 = vector.broadcast %cst_36 : f32 to vector<8x256xf32>
    %120 = arith.mulf %118, %119 : vector<8x256xf32>
    %c0_37 = arith.constant 0 : index
    %c0_38 = arith.constant 0 : index
    %121 = vector.load %arg2[%c0_37, %c0_38] : memref<8x256xf32, #tpu.memory_space<vmem>>, vector<8x256xf32>
    %122 = arith.addf %121, %120 : vector<8x256xf32>
    %c0_39 = arith.constant 0 : index
    %c0_40 = arith.constant 0 : index
    %123 = vector.load %arg3[%c0_39, %c0_40] : memref<8x256xf32, #tpu.memory_space<vmem>>, vector<8x256xf32>
    tpu.vector_store %arg3[%c0_39, %c0_40], %122 {strides = array<i32>} : memref<8x256xf32, #tpu.memory_space<vmem>>, vector<8x256xf32>,
    return
  }
  func.func @transform_0(%arg0: i32, %arg1: memref<1xi32, #tpu.memory_space<smem>>) -> (i32, i32) {
    %c0_i32 = arith.constant 0 : i32
    %c0_i32_0 = arith.constant 0 : i32
    return %arg0, %c0_i32 : i32, i32
  }
  func.func @transform_1(%arg0: i32, %arg1: memref<1xi32, #tpu.memory_space<smem>>) -> (i32, i32) {
    %c0_i32 = arith.constant 0 : i32
    %c0_i32_0 = arith.constant 0 : i32
    return %arg0, %c0_i32 : i32, i32
  }
}

</mosaic_0001>

<llo_original>
// kernel: gaussian_noise_layer.1
$region0: #{gaussian_noise_layer.1}
  #allocation0 [shape = 'u32[]', space=smem, size = 0x4, offset = 0x4, fixed_abs, tag = 'smem constant byte address 0x4 - core index']
  #allocation1 [shape = 'u32[144,128]{1,0:T(1,128)}', space=vmem, size = 0x12000, scoped, tag = 'internal scratch']
  #allocation2 [shape = 's32[1]{0}', space=sflag, size = 0x4, scoped, tag = 'scoped memory for gaussian_noise_layer.1']
  #allocation3 [shape = 's32[1]{0:T(128)S(6)}', space=smem, size = 0x200, scoped, tag = 'prefetched SMEM operand 0']
  %s0 = inlined_call_operand.<no memory space> [shape: s32[1], index: 0, kind: input, shape index: {}]
  %s1 = inlined_call_operand.vmem [shape: f32[8,256], index: 1, kind: input, shape index: {}]
  %s2 = inlined_call_operand.vmem [shape: f32[8,256], index: 2, kind: output, shape index: {}]
  %s3 = sld [smem:[#allocation0]]
  $region14: #{gaussian_noise_layer.1} parent=0
    _
  %s5 = ssub.s32 1, %s3
  %s6 = scalar_select 0, %s5, %s3
  %7 = sst [smem:[#allocation3]] %s0
  // Predicated region
  $region2: #{gaussian_noise_layer.1} parent=0 // pred_check
    _
  $region3: #{gaussian_noise_layer.1} parent=0 // pred_check_branch
    %9 = sbr.rel (0) target = $region5
  $region4: #{gaussian_noise_layer.1} parent=0 // pred_region
    _
  $region5: #{gaussian_noise_layer.1} parent=0 // pred_fallthru
    _
  %v10 = vlaneseq
  %v11 = vshrl.u32 %v10, 7
  %v12 = vlaneseq
  %v13 = vand.u32 %v12, 127
  %v14 = vadd.s32 %v13, 128
  %s15 = smul.u32 0, 2048
  %v16 = vmul.u32 %v11, 256
  %v17 = vstv %s15
  %v18 = vadd.s32 %v17, %v16
  %v19 = vadd.s32 %v18, %v13
  %v20 = vadd.s32 %v18, %v14
  %s21 = sld [smem:[#allocation3]]
  %s22 = smul.u32 %s21, 2654435769
  %v23 = vstv %s22
  %v24 = vxor.u32 %v19, %v23
  %v25 = vxor.u32 %v20, %v23
  %v26 = vshrl.u32 %v24, 16
  %v27 = vshrl.u32 %v25, 16
  %v28 = vxor.u32 %v24, %v26
  %v29 = vxor.u32 %v25, %v27
  %v30 = vmul.u32 %v28, 2146121005
  %v31 = vmul.u32 %v29, 2146121005
  %v32 = vshrl.u32 %v30, 15
  %v33 = vshrl.u32 %v31, 15
  %v34 = vxor.u32 %v30, %v32
  %v35 = vxor.u32 %v31, %v33
  %v36 = vmul.u32 %v34, 2221713035
  %v37 = vmul.u32 %v35, 2221713035
  %v38 = vshrl.u32 %v36, 16
  %v39 = vshrl.u32 %v37, 16
  %v40 = vxor.u32 %v36, %v38
  %v41 = vxor.u32 %v37, %v39
  %v42 = vxor.u32 %v40, 2246822507
  %v43 = vxor.u32 %v41, 2246822507
  %v44 = vshrl.u32 %v42, 16
  %v45 = vshrl.u32 %v43, 16
  %v46 = vxor.u32 %v42, %v44
  %v47 = vxor.u32 %v43, %v45
  %v48 = vmul.u32 %v46, 2146121005
  %v49 = vmul.u32 %v47, 2146121005
  %v50 = vshrl.u32 %v48, 15
  %v51 = vshrl.u32 %v49, 15
  %v52 = vxor.u32 %v48, %v50
  %v53 = vxor.u32 %v49, %v51
  %v54 = vmul.u32 %v52, 2221713035
  %v55 = vmul.u32 %v53, 2221713035
  %v56 = vshrl.u32 %v54, 16
  %v57 = vshrl.u32 %v55, 16
  %v58 = vxor.u32 %v54, %v56
  %v59 = vxor.u32 %v55, %v57
  %v60 = vshrl.u32 %v58, 8
  %v61 = vshrl.u32 %v59, 8
  %v62 = vcvt.s32.f32 %v60
  %v63 = vcvt.s32.f32 %v61
  %v64 = vmul.f32 %v62, 5.9604645e-08
  %v65 = vmul.f32 %v63, 5.9604645e-08
  %v66 = vadd.f32 %v64, 2.9802322e-08
  %v67 = vadd.f32 %v65, 2.9802322e-08
  %v68 = vmul.f32 %v66, 2.0
  %v69 = vmul.f32 %v67, 2.0
  %v70 = vsub.f32 %v68, 1.0
  %v71 = vsub.f32 %v69, 1.0
  %v72 = vsub.f32 0.0, %v70
  %v73 = vsub.f32 0.0, %v71
  %v74 = vmul.f32 %v70, %v72
  %v75 = vmul.f32 %v71, %v73
  %v76 = vadd.f32 %v74, 1.0
  %v77 = vlog2.pop %v76
  %v78 = vmul.f32 %v77, 0.6931472
  %v79 = vmul.f32 -0.5, %v74
  %v80 = vadd.f32 %v79, 1.0
  %v81 = vmul.f32 %v80, %v74
  %v82 = vand.u32 2147483647, %v74
  %vm83 = vcmp.lt.f32.partialorder %v82, 0.0004427343
  %v84 = vsel %vm83, %v81, %v78
  %v85 = vadd.f32 %v75, 1.0
  %v86 = vlog2.pop %v85
  %v87 = vmul.f32 %v86, 0.6931472
  %v88 = vmul.f32 -0.5, %v75
  %v89 = vadd.f32 %v88, 1.0
  %v90 = vmul.f32 %v89, %v75
  %v91 = vand.u32 2147483647, %v75
  %vm92 = vcmp.lt.f32.partialorder %v91, 0.0004427343
  %v93 = vsel %vm92, %v90, %v87
  %v94 = vsub.f32 0.0, %v84
  %v95 = vsub.f32 0.0, %v93
  %vm96 = vcmp.lt.f32.partialorder %v94, 5.0
  %vm97 = vcmp.lt.f32.partialorder %v95, 5.0
  %v98 = vsub.f32 %v94, 2.5
  %v99 = vsub.f32 %v95, 2.5
  %v100 = vrsqrt.pop %v94
  %v101 = vmul.f32 %v94, %v100
  %vm102 = vcmp.eq.f32.partialorder %v94, inf
  %v103 = vsel %vm102, %v94, %v101
  %vm104 = vcmp.eq.f32.partialorder %v94, 0.0
  %v105 = vand.u32 %v94, 2147483648
  %v106 = vsel %vm104, %v105, %v103
  %v107 = vrsqrt.pop %v95
  %v108 = vmul.f32 %v95, %v107
  %vm109 = vcmp.eq.f32.partialorder %v95, inf
  %v110 = vsel %vm109, %v95, %v108
  %vm111 = vcmp.eq.f32.partialorder %v95, 0.0
  %v112 = vand.u32 %v95, 2147483648
  %v113 = vsel %vm111, %v112, %v110
  %v114 = vsub.f32 %v106, 3.0
  %v115 = vsub.f32 %v113, 3.0
  %v116 = vsel %vm96, %v98, %v114
  %v117 = vsel %vm97, %v99, %v115
  %v118 = vsel %vm96, 2.8102264e-08, -0.00020021426
  %v119 = vsel %vm97, 2.8102264e-08, -0.00020021426
  %v120 = vsel %vm96, 3.4327394e-07, 0.00010095056
  %v121 = vsel %vm97, 3.4327394e-07, 0.00010095056
  %v122 = vmul.f32 %v118, %v116
  %v123 = vmul.f32 %v119, %v117
  %v124 = vadd.f32 %v120, %v122
  %v125 = vadd.f32 %v121, %v123
  %v126 = vsel %vm96, -3.5233877e-06, 0.0013493432
  %v127 = vsel %vm97, -3.5233877e-06, 0.0013493432
  %v128 = vmul.f32 %v124, %v116
  %v129 = vmul.f32 %v125, %v117
  %v130 = vadd.f32 %v126, %v128
  %v131 = vadd.f32 %v127, %v129
  %v132 = vsel %vm96, -4.3915065e-06, -0.0036734284
  %v133 = vsel %vm97, -4.3915065e-06, -0.0036734284
  %v134 = vmul.f32 %v130, %v116
  %v135 = vmul.f32 %v131, %v117
  %v136 = vadd.f32 %v132, %v134
  %v137 = vadd.f32 %v133, %v135
  %v138 = vsel %vm96, 0.00021858087, 0.0057395077
  %v139 = vsel %vm97, 0.00021858087, 0.0057395077
  %v140 = vmul.f32 %v136, %v116
  %v141 = vmul.f32 %v137, %v117
  %v142 = vadd.f32 %v138, %v140
  %v143 = vadd.f32 %v139, %v141
  %v144 = vsel %vm96, -0.001253725, -0.0076224613
  %v145 = vsel %vm97, -0.001253725, -0.0076224613
  %v146 = vmul.f32 %v142, %v116
  %v147 = vmul.f32 %v143, %v117
  %v148 = vadd.f32 %v144, %v146
  %v149 = vadd.f32 %v145, %v147
  %v150 = vsel %vm96, -0.0041776816, 0.0094388705
  %v151 = vsel %vm97, -0.0041776816, 0.0094388705
  %v152 = vmul.f32 %v148, %v116
  %v153 = vmul.f32 %v149, %v117
  %v154 = vadd.f32 %v150, %v152
  %v155 = vadd.f32 %v151, %v153
  %v156 = vsel %vm96, 0.24664073, 1.001674
  %v157 = vsel %vm97, 0.24664073, 1.001674
  %v158 = vmul.f32 %v154, %v116
  %v159 = vmul.f32 %v155, %v117
  %v160 = vadd.f32 %v156, %v158
  %v161 = vadd.f32 %v157, %v159
  %v162 = vsel %vm96, 1.5014094, 2.8329768
  %v163 = vsel %vm97, 1.5014094, 2.8329768
  %v164 = vmul.f32 %v160, %v116
  %v165 = vmul.f32 %v161, %v117
  %v166 = vadd.f32 %v162, %v164
  %v167 = vadd.f32 %v163, %v165
  %v168 = vand.u32 2147483647, %v70
  %v169 = vand.u32 2147483647, %v71
  %vm170 = vcmp.eq.f32.partialorder %v168, 1.0
  %vm171 = vcmp.eq.f32.partialorder %v169, 1.0
  %v172 = vmul.f32 %v70, inf
  %v173 = vmul.f32 %v71, inf
  %v174 = vmul.f32 %v166, %v70
  %v175 = vmul.f32 %v167, %v71
  %v176 = vsel %vm170, %v172, %v174
  %v177 = vsel %vm171, %v173, %v175
  %v178 = vmul.f32 %v176, 1.4142135
  %v179 = vmul.f32 %v177, 1.4142135
  %v180 = vsub.f32 %v178, 0.5
  %v181 = vsub.f32 %v179, 0.5
  %v182 = vmul.f32 %v180, 0.1
  %v183 = vmul.f32 %v181, 0.1
  %v184 = vld [vmem:[%s1] sm:$0xff]
  %v185 = vld [vmem:[%s1 + $0x8] sm:$0xff]
  %v186 = vadd.f32 %v184, %v182
  %v187 = vadd.f32 %v185, %v183
  %188 = vst [vmem:[%s2] sm:$0xff] %v186
  %189 = vst [vmem:[%s2 + $0x8] sm:$0xff] %v187
  // Predicated region
  $region6: #{gaussian_noise_layer.1} parent=0 // pred_check
    _
  $region7: #{gaussian_noise_layer.1} parent=0 // pred_check_branch
    %191 = sbr.rel (0) target = $region9
  $region8: #{gaussian_noise_layer.1} parent=0 // pred_region
    _
  $region9: #{gaussian_noise_layer.1} parent=0 // pred_fallthru
    _
  // Predicated region
  $region10: #{gaussian_noise_layer.1} parent=0 // pred_check
    _
  $region11: #{gaussian_noise_layer.1} parent=0 // pred_check_branch
    %193 = sbr.rel (0) target = $region13
  $region12: #{gaussian_noise_layer.1} parent=0 // pred_region
    _
  $region13: #{gaussian_noise_layer.1} parent=0 // pred_fallthru
    _

</llo_original>
